<compile_context>
chip_gen: v6e
topology: v6e:2x2x1
jax: 0.10.0
libtpu: 0.0.40
codegen_flags: <defaults>
</compile_context>

<pallas_src>
import functools

import jax
import jax.numpy as jnp
from jax.experimental import pallas as pl
from jax.experimental.pallas import tpu as pltpu

_LANE = 128
_MAX_TM = 4096  # rows per block -> 2 MiB per f32 input block


def _round_up(x, m):
    return (x + m - 1) // m * m


def _gn_prng_kernel(seed_ref, x_ref, o_ref, *, sigma):
    # Unique seed per grid step so every tile (and each TensorCore on v7x under
    # the "parallel" grid axis) draws fresh, independent noise.
    pltpu.prng_seed(seed_ref[0] * pl.num_programs(0) + pl.program_id(0))
    x = x_ref[...].astype(jnp.float32)
    noise = pltpu.stateful_normal(x.shape, jnp.float32)
    # Fused: out = x + (sigma * x) * noise == x * (1 + sigma * noise)
    o_ref[...] = (x * (1.0 + jnp.float32(sigma) * noise)).astype(o_ref.dtype)


def _gn_ext_noise_kernel(x_ref, n_ref, o_ref, *, sigma):
    # Fallback kernel: noise is an input (pre-sampled outside the kernel).
    x = x_ref[...].astype(jnp.float32)
    o_ref[...] = (x * (1.0 + jnp.float32(sigma) * n_ref[...])).astype(o_ref.dtype)


def gaussian_noise(x, seed, *, sigma=0.1, is_relative_detach=True):
    """Pallas implementation of GaussianNoise.forward (NCHW or any shape)."""
    # TODO(synk): is_relative_detach only changes the backward pass (whether the
    # noise scale is detached); the forward value is identical, so it is unused.
    del is_relative_detach
    if sigma == 0:
        return x

    orig_shape = x.shape
    n = x.size
    # Flatten to a lane-dense 2D slab; rows rounded to 16 (f32- and bf16-safe).
    rows = _round_up(pl.cdiv(n, _LANE), 16)
    total = rows * _LANE
    flat = x.reshape(-1)
    if total != n:
        flat = jnp.pad(flat, (0, total - n))
    x2 = flat.reshape(rows, _LANE)

    tm = min(_MAX_TM, rows)
    grid = (pl.cdiv(rows, tm),)
    blk = pl.BlockSpec((tm, _LANE), lambda i: (i, 0))

    if jax.default_backend() == "tpu":
        seed_arr = jnp.asarray([seed], dtype=jnp.int32)
        cost = pl.CostEstimate(
            flops=2 * total,
            transcendentals=3 * total,  # Box-Muller log/sqrt/sin-cos per element
            bytes_accessed=2 * total * x.dtype.itemsize,
        )
        out2 = pl.pallas_call(
            functools.partial(_gn_prng_kernel, sigma=sigma),
            out_shape=jax.ShapeDtypeStruct((rows, _LANE), x.dtype),
            grid=grid,
            in_specs=[
                pl.BlockSpec(memory_space=pltpu.MemorySpace.SMEM),  # seed scalar
                blk,                                                 # x slab tiles
            ],
            out_specs=blk,
            compiler_params=pltpu.CompilerParams(
                dimension_semantics=("parallel",)),
            cost_estimate=cost,
            # NOTE: input_output_aliases={1: 0} would save one HBM buffer when the
            # caller no longer needs x; left off so x remains usable after the call.
        )(seed_arr, x2)
    else:
        # Non-TPU backends (CPU interpret fallback): pltpu.prng_seed /
        # stateful_normal have no lowering there, so pre-sample the noise.
        key = jax.random.PRNGKey(int(seed))
        noise = jax.random.normal(key, (rows, _LANE), dtype=jnp.float32)
        out2 = pl.pallas_call(
            functools.partial(_gn_ext_noise_kernel, sigma=sigma),
            out_shape=jax.ShapeDtypeStruct((rows, _LANE), x.dtype),
            grid=grid,
            in_specs=[blk, blk],
            out_specs=blk,
        )(x2, noise)

    return out2.reshape(-1)[:n].reshape(orig_shape)


if __name__ == "__main__":
    key = jax.random.PRNGKey(0)
    # Small conv-style input: batch=2, channels=4, spatial=16x16 (NCHW).
    x = jax.random.normal(key, (2, 4, 16, 16), dtype=jnp.float32)

    y = gaussian_noise(x, seed=0, sigma=0.1, is_relative_detach=True)
    y = jax.block_until_ready(y)

    # Sanity checks: shape/dtype preserved, output finite, perturbation is
    # relative (|y - x| / |x| ~ sigma * |N(0,1)|).
    assert y.shape == x.shape and y.dtype == x.dtype
    assert bool(jnp.isfinite(y).all())
    rel = jnp.abs(y - x) / (jnp.abs(x) + 1e-8)
    assert float(rel.mean()) < 1.0

    # sigma == 0 path: identity.
    y0 = jax.block_until_ready(gaussian_noise(x, seed=0, sigma=0.0))
    assert bool(jnp.array_equal(y0, x))

    print("KERNEL_OK")
</pallas_src>

<mosaic_0001>
module attributes {stable_mosaic.version = 11 : i64} {
  func.func @_gn_ext_noise_kernel(%arg0: i32, %arg1: memref<16x128xf32, #tpu.memory_space<vmem>>, %arg2: memref<16x128xf32, #tpu.memory_space<vmem>>, %arg3: memref<16x128xf32, #tpu.memory_space<vmem>>) attributes {dimension_semantics = [#tpu.dimension_semantics<arbitrary>], iteration_bounds = array<i64: 1>, scalar_prefetch = 0 : i64, scratch_operands = 0 : i64, tpu.core_type = #tpu.core_type<tc>, window_params = [{transform_indices = @transform_0, window_bounds = array<i64: 16, 128>}, {transform_indices = @transform_1, window_bounds = array<i64: 16, 128>}, {transform_indices = @transform_2, window_bounds = array<i64: 16, 128>}]} {
    %c0 = arith.constant 0 : index
    %c0_0 = arith.constant 0 : index
    %0 = vector.load %arg1[%c0, %c0_0] : memref<16x128xf32, #tpu.memory_space<vmem>>, vector<16x128xf32>
    %c0_1 = arith.constant 0 : index
    %c0_2 = arith.constant 0 : index
    %1 = vector.load %arg2[%c0_1, %c0_2] : memref<16x128xf32, #tpu.memory_space<vmem>>, vector<16x128xf32>
    %cst = arith.constant 1.000000e-01 : f32
    %2 = vector.broadcast %cst : f32 to vector<16x128xf32>
    %3 = arith.mulf %2, %1 : vector<16x128xf32>
    %cst_3 = arith.constant 1.000000e+00 : f32
    %4 = vector.broadcast %cst_3 : f32 to vector<16x128xf32>
    %5 = arith.addf %4, %3 : vector<16x128xf32>
    %6 = arith.mulf %0, %5 : vector<16x128xf32>
    %c0_4 = arith.constant 0 : index
    %c0_5 = arith.constant 0 : index
    %7 = vector.load %arg3[%c0_4, %c0_5] : memref<16x128xf32, #tpu.memory_space<vmem>>, vector<16x128xf32>
    tpu.vector_store %arg3[%c0_4, %c0_5], %6 {strides = array<i32>} : memref<16x128xf32, #tpu.memory_space<vmem>>, vector<16x128xf32>,
    return
  }
  func.func @transform_0(%arg0: i32) -> (i32, i32) {
    %c0_i32 = arith.constant 0 : i32
    %c0_i32_0 = arith.constant 0 : i32
    return %arg0, %c0_i32 : i32, i32
  }
  func.func @transform_1(%arg0: i32) -> (i32, i32) {
    %c0_i32 = arith.constant 0 : i32
    %c0_i32_0 = arith.constant 0 : i32
    return %arg0, %c0_i32 : i32, i32
  }
  func.func @transform_2(%arg0: i32) -> (i32, i32) {
    %c0_i32 = arith.constant 0 : i32
    %c0_i32_0 = arith.constant 0 : i32
    return %arg0, %c0_i32 : i32, i32
  }
}

</mosaic_0001>

<llo_original>
// kernel: tpu_custom_call.1
$region0: #{tpu_custom_call.1}
  #allocation0 [shape = 'u32[]', space=smem, size = 0x4, offset = 0x4, fixed_abs, tag = 'smem constant byte address 0x4 - core index']
  #allocation1 [shape = 'u32[144,128]{1,0:T(1,128)}', space=vmem, size = 0x12000, scoped, tag = 'internal scratch']
  %s0 = inlined_call_operand.hbm [shape: f32[16,128], index: 0, kind: input, shape index: {}]
  %s1 = inlined_call_operand.hbm [shape: f32[16,128], index: 1, kind: input, shape index: {}]
  %s2 = inlined_call_operand.hbm [shape: f32[16,128], index: 2, kind: output, shape index: {}]
  %s3 = sld [smem:[#allocation0]]
  $region26: #{tpu_custom_call.1} parent=0
    _
  %s5 = ssub.s32 1, %s3
  %s6 = scalar_select 0, %s5, %s3
  $region1: #{tpu_custom_call.1} parent=0
    #allocation2 [shape = 'u8[8192]{0}', space=vmem, size = 0x2000, scoped, tag = 'input window, operand 0, single buffered']
    #allocation3 [shape = 's32[1]{0}', space=sflag, size = 0x4, scoped, tag = 'scoped memory for tpu_custom_call.1']
    #allocation4 [shape = 's32[1]{0}', space=sflag, size = 0x4, scoped, tag = 'scoped memory for tpu_custom_call.1']
    #allocation5 [shape = 'u8[8192]{0}', space=vmem, size = 0x2000, scoped, tag = 'input window, operand 1, single buffered']
    #allocation6 [shape = 's32[1]{0}', space=sflag, size = 0x4, scoped, tag = 'scoped memory for tpu_custom_call.1']
    #allocation7 [shape = 'u8[8192]{0}', space=vmem, size = 0x2000, scoped, tag = 'output window, operand 0, single buffered']
    %7 = vsyncpa [#allocation3], 0
    %8 = vsyncpa [#allocation6], 0
    %9 = vsyncpa [#allocation4], 0
    // Predicated region
    $region2: #{tpu_custom_call.1} parent=1 // pred_check
      _
    $region3: #{tpu_custom_call.1} parent=1 // pred_check_branch
      %11 = sbr.rel (0) target = $region5
    $region4: #{tpu_custom_call.1} parent=1 // pred_region
      %s13 = ssub.s32 256, 256
      %14 = vsyncadd [#allocation3], %s13
      %s15 = sshll.u32 [#allocation2], 4
      %s16 = int_to_ptr.vmem [resolvable:$true] %s15
      %21 = dma.hbm_to_vmem [thread:$0]  %s0, 256, %s16, [#allocation3], 128, 128, 8
    $region5: #{tpu_custom_call.1} parent=1 // pred_fallthru
      _
    // Predicated region
    $region6: #{tpu_custom_call.1} parent=1 // pred_check
      _
    $region7: #{tpu_custom_call.1} parent=1 // pred_check_branch
      %23 = sbr.rel (0) target = $region9
    $region8: #{tpu_custom_call.1} parent=1 // pred_region
      %s25 = ssub.s32 256, 256
      %26 = vsyncadd [#allocation6], %s25
      %s27 = sshll.u32 [#allocation5], 4
      %s28 = int_to_ptr.vmem [resolvable:$true] %s27
      %33 = dma.hbm_to_vmem [thread:$0]  %s1, 256, %s28, [#allocation6], 128, 128, 8
    $region9: #{tpu_custom_call.1} parent=1 // pred_fallthru
      _
    // Predicated region
    $region10: #{tpu_custom_call.1} parent=1 // pred_check
      _
    $region11: #{tpu_custom_call.1} parent=1 // pred_check_branch
      %35 = sbr.rel (0) target = $region13
    $region12: #{tpu_custom_call.1} parent=1 // pred_region
      %36 = dma.done [#allocation3], 256
    $region13: #{tpu_custom_call.1} parent=1 // pred_fallthru
      _
    // Predicated region
    $region14: #{tpu_custom_call.1} parent=1 // pred_check
      _
    $region15: #{tpu_custom_call.1} parent=1 // pred_check_branch
      %38 = sbr.rel (0) target = $region17
    $region16: #{tpu_custom_call.1} parent=1 // pred_region
      %39 = dma.done [#allocation6], 256
    $region17: #{tpu_custom_call.1} parent=1 // pred_fallthru
      _
    %v40 = vld [vmem:[#allocation2] sm:$0xff]
    %v41 = vld [vmem:[#allocation2 + $0x8] sm:$0xff]
    %v42 = vld [vmem:[#allocation5] sm:$0xff]
    %v43 = vld [vmem:[#allocation5 + $0x8] sm:$0xff]
    %v44 = vmul.f32 %v42, 0.1
    %v45 = vmul.f32 %v43, 0.1
    %v46 = vadd.f32 %v44, 1.0
    %v47 = vadd.f32 %v45, 1.0
    %v48 = vmul.f32 %v40, %v46
    %v49 = vmul.f32 %v41, %v47
    %50 = vst [vmem:[#allocation7] sm:$0xff] %v48
    %51 = vst [vmem:[#allocation7 + $0x8] sm:$0xff] %v49
    // Predicated region
    $region18: #{tpu_custom_call.1} parent=1 // pred_check
      _
    $region19: #{tpu_custom_call.1} parent=1 // pred_check_branch
      %53 = sbr.rel (0) target = $region21
    $region20: #{tpu_custom_call.1} parent=1 // pred_region
      %s55 = ssub.s32 256, 256
      %56 = vsyncadd [#allocation4], %s55
      %s57 = sshll.u32 [#allocation7], 4
      %s58 = int_to_ptr.vmem [resolvable:$true] %s57
      %63 = dma.vmem_to_hbm [thread:$0]  %s58, 256, %s2, [#allocation4], 128, 128, 8
    $region21: #{tpu_custom_call.1} parent=1 // pred_fallthru
      _
    // Predicated region
    $region22: #{tpu_custom_call.1} parent=1 // pred_check
      _
    $region23: #{tpu_custom_call.1} parent=1 // pred_check_branch
      %65 = sbr.rel (0) target = $region25
    $region24: #{tpu_custom_call.1} parent=1 // pred_region
      %66 = dma.done [#allocation4], 256
    $region25: #{tpu_custom_call.1} parent=1 // pred_fallthru
      _
    %67 = vsyncpa [#allocation3], 1
    %68 = vsyncpa [#allocation6], 1
    %69 = vsyncpa [#allocation4], 1

</llo_original>
